<compile_context>
chip_gen: v7x
topology: tpu7x:2x2x1
jax: 0.10.0
libtpu: 0.0.40
codegen_flags: <defaults>
</compile_context>

<pallas_src>
import functools

import jax
import jax.numpy as jnp
from jax.experimental import pallas as pl
from jax.experimental.pallas import tpu as pltpu


def _soft_triplet_kernel(xdb_ref, xq_ref, sqdb_ref, sqq_ref,
                         labdb_ref, labq_ref, out_ref, *,
                         margin, alpha, n_valid):
    """One grid step: per-row losses for a lane-dense (1, block_q) query slice."""
    xdb = xdb_ref[...]                       # (Np, D) bf16, resident
    xq = xq_ref[...]                         # (TM, D) bf16, streamed
    np_total = xdb.shape[0]

    # gram2[j, q] = 2 * <x_j, x_q>, f32 accumulate on the MXU.  The factor 2
    # is folded into the small (TM, D) operand (exact in bf16) instead of a
    # full (Np, TM) VPU multiply.
    gram2 = jax.lax.dot_general(
        xdb, xq * 2.0, (((1,), (1,)), ((), ())),
        preferred_element_type=jnp.float32)  # (Np, TM) f32

    # Squared euclidean distance; clamp like the reference (cancellation in
    # the bf16 gram can push it slightly negative).
    d2 = sqdb_ref[...] + sqq_ref[...] - gram2
    dist = jnp.sqrt(jnp.maximum(d2, 1e-12))  # (Np, TM)

    labdb = labdb_ref[...]                   # (Np, 1) int32
    labq = labq_ref[...]                     # (1, TM) int32
    # Mask out padded database rows.  Padded *query* lanes produce garbage
    # that the wrapper slices away before the mean.
    row_valid = jax.lax.broadcasted_iota(jnp.int32, (np_total, 1), 0) < n_valid
    same = labdb == labq
    is_pos = jnp.logical_and(same, row_valid)
    is_neg = jnp.logical_and(jnp.logical_not(same), row_valid)

    ad = alpha * dist                        # (Np, TM)

    # Soft-min over positives (includes the ~0 self pair, like the reference):
    # exp argument <= 0 and the diagonal guarantees sum >= ~1, so no max-shift
    # or -inf select is needed.
    s_pos = jnp.sum(jnp.where(is_pos, jnp.exp(-ad), 0.0),
                    axis=0, keepdims=True)   # (1, TM)
    dist_ap = jnp.log(s_pos) * (-1.0 / alpha)

    # Soft-max over negatives: shifted LSE (alpha*dist may be large for
    # unnormalized features).  Requires >= 1 negative per row.
    neg_vals = jnp.where(is_neg, ad, -jnp.inf)
    m_neg = jnp.max(neg_vals, axis=0, keepdims=True)
    s_neg = jnp.sum(jnp.exp(neg_vals - m_neg), axis=0, keepdims=True)
    dist_an = (m_neg + jnp.log(s_neg)) * (1.0 / alpha)

    out_ref[...] = jnp.maximum(dist_ap - dist_an + margin, 0.0)  # (1, TM)


def soft_triplet_loss(embeddings, labels, *, margin=0.3,
                      normalize_feature=True, alpha=1.0, block_q=128):
    """Pallas-backed SoftTripletLoss forward. Returns a scalar f32 loss."""
    n, d = embeddings.shape

    # Normalization / squared norms hoisted out of the kernel so they are not
    # recomputed on every grid step (elementwise math stays in f32).
    x = embeddings.astype(jnp.float32)
    if normalize_feature:
        # F.normalize(p=2, dim=1): x / max(||x||_2, eps)
        norm = jnp.sqrt(jnp.sum(x * x, axis=1, keepdims=True))
        x = x / jnp.maximum(norm, 1e-12)

    # bf16 operand for the MXU; squared norms are computed *from the bf16
    # values* (in f32) so the diagonal of the distance matrix cancels to ~0,
    # matching the f32 reference's clamp-to-1e-12 behavior.
    x_bf = x.astype(jnp.bfloat16)
    sq = jnp.sum(x_bf.astype(jnp.float32) ** 2, axis=1)       # (n,)

    # Pad the batch to a multiple of the query-block size (128 keeps the
    # streamed tile MXU/sublane aligned and the output blocks lane-aligned).
    n_pad = pl.cdiv(n, block_q) * block_q
    pad = n_pad - n
    x_bf = jnp.pad(x_bf, ((0, pad), (0, 0)))
    sq = jnp.pad(sq, (0, pad))
    lab = jnp.pad(labels.astype(jnp.int32), (0, pad), constant_values=-1)

    sq_col = sq.reshape(n_pad, 1)
    sq_row = sq.reshape(1, n_pad)
    lab_col = lab.reshape(n_pad, 1)
    lab_row = lab.reshape(1, n_pad)

    kernel = functools.partial(
        _soft_triplet_kernel,
        margin=float(margin), alpha=float(alpha), n_valid=int(n))

    # NOTE: the database-side operands stay fully resident in VMEM; for very
    # large N (> ~16k rows) a second grid axis with an LSE carry would be
    # needed instead of a resident operand.
    per_row = pl.pallas_call(
        kernel,
        out_shape=jax.ShapeDtypeStruct((1, n_pad), jnp.float32),
        grid_spec=pltpu.PrefetchScalarGridSpec(
            num_scalar_prefetch=0,
            grid=(n_pad // block_q,),
            in_specs=[
                # Resident database-side operands (constant block index).
                pl.BlockSpec((n_pad, d), lambda i: (0, 0)),
                # Streamed query tile + its norms / labels.
                pl.BlockSpec((block_q, d), lambda i: (i, 0)),
                pl.BlockSpec((n_pad, 1), lambda i: (0, 0)),
                pl.BlockSpec((1, block_q), lambda i: (0, i)),
                pl.BlockSpec((n_pad, 1), lambda i: (0, 0)),
                pl.BlockSpec((1, block_q), lambda i: (0, i)),
            ],
            out_specs=pl.BlockSpec((1, block_q), lambda i: (0, i)),
        ),
        compiler_params=pltpu.CompilerParams(
            dimension_semantics=("parallel",),
            vmem_limit_bytes=48 * 1024 * 1024),
    )(x_bf, x_bf, sq_col, sq_row, lab_col, lab_row)

    # Final (tiny) mean over the real rows runs in XLA.
    return jnp.mean(per_row[0, :n])


if __name__ == "__main__":
    key = jax.random.PRNGKey(0)
    N, D = 16, 32
    embeddings = jax.random.normal(key, (N, D), dtype=jnp.float32)
    # PK-style labels: 4 classes x 4 samples each -> every row has at least
    # one positive and one negative, matching the reference's assumption.
    labels = jnp.repeat(jnp.arange(4, dtype=jnp.int32), 4)

    loss = soft_triplet_loss(embeddings, labels,
                             margin=0.3, normalize_feature=True, alpha=1.0)
    jax.block_until_ready(loss)
    print("KERNEL_OK")
</pallas_src>

<mosaic_0001>
module attributes {stable_mosaic.version = 11 : i64} {
  func.func @_soft_triplet_kernel(%arg0: i32, %arg1: memref<128x32xbf16, #tpu.memory_space<vmem>>, %arg2: memref<128x32xbf16, #tpu.memory_space<vmem>>, %arg3: memref<128x1xf32, #tpu.memory_space<vmem>>, %arg4: memref<1x128xf32, #tpu.memory_space<vmem>>, %arg5: memref<128x1xi32, #tpu.memory_space<vmem>>, %arg6: memref<1x128xi32, #tpu.memory_space<vmem>>, %arg7: memref<1x128xf32, #tpu.memory_space<vmem>>) attributes {dimension_semantics = [#tpu.dimension_semantics<parallel>], iteration_bounds = array<i64: 1>, scalar_prefetch = 0 : i64, scratch_operands = 0 : i64, tpu.core_type = #tpu.core_type<tc>, window_params = [{pipeline_mode = #tpu.pipeline_mode<synchronous>, transform_indices = @transform_0, window_bounds = array<i64: 128, 32>}, {transform_indices = @transform_1, window_bounds = array<i64: 128, 32>}, {pipeline_mode = #tpu.pipeline_mode<synchronous>, transform_indices = @transform_2, window_bounds = array<i64: 128, 1>}, {transform_indices = @transform_3, window_bounds = array<i64: 1, 128>}, {pipeline_mode = #tpu.pipeline_mode<synchronous>, transform_indices = @transform_4, window_bounds = array<i64: 128, 1>}, {transform_indices = @transform_5, window_bounds = array<i64: 1, 128>}, {transform_indices = @transform_6, window_bounds = array<i64: 1, 128>}]} {
    %c0 = arith.constant 0 : index
    %c0_0 = arith.constant 0 : index
    %0 = vector.load %arg1[%c0, %c0_0] : memref<128x32xbf16, #tpu.memory_space<vmem>>, vector<128x32xbf16>
    %c0_1 = arith.constant 0 : index
    %c0_2 = arith.constant 0 : index
    %1 = vector.load %arg2[%c0_1, %c0_2] : memref<128x32xbf16, #tpu.memory_space<vmem>>, vector<128x32xbf16>
    %cst = arith.constant 2.000000e+00 : bf16
    %2 = vector.broadcast %cst : bf16 to vector<128x32xbf16>
    %3 = arith.mulf %1, %2 : vector<128x32xbf16>
    %cst_3 = arith.constant dense<0.000000e+00> : vector<128x128xf32>
    %4 = tpu.matmul %0, %3, %cst_3 {dimension_numbers = #tpu.dot_dimension_numbers<[1], [1], [0], [0], [0, 0, 1, 0], [], []>} : vector<128x32xbf16>, vector<128x32xbf16>, vector<128x128xf32> -> vector<128x128xf32>
    %c0_4 = arith.constant 0 : index
    %c0_5 = arith.constant 0 : index
    %5 = vector.load %arg3[%c0_4, %c0_5] : memref<128x1xf32, #tpu.memory_space<vmem>>, vector<128x1xf32>
    %c0_6 = arith.constant 0 : index
    %c0_7 = arith.constant 0 : index
    %6 = vector.load %arg4[%c0_6, %c0_7] : memref<1x128xf32, #tpu.memory_space<vmem>>, vector<1x128xf32>
    %7 = vector.broadcast %5 : vector<128x1xf32> to vector<128x128xf32>
    %8 = vector.broadcast %6 : vector<1x128xf32> to vector<128x128xf32>
    %9 = arith.addf %7, %8 : vector<128x128xf32>
    %10 = arith.subf %9, %4 : vector<128x128xf32>
    %cst_8 = arith.constant 9.99999996E-13 : f32
    %11 = vector.broadcast %cst_8 : f32 to vector<128x128xf32>
    %12 = arith.maximumf %10, %11 : vector<128x128xf32>
    %13 = math.sqrt %12 : vector<128x128xf32>
    %c0_9 = arith.constant 0 : index
    %c0_10 = arith.constant 0 : index
    %14 = vector.load %arg5[%c0_9, %c0_10] : memref<128x1xi32, #tpu.memory_space<vmem>>, vector<128x1xi32>
    %c0_11 = arith.constant 0 : index
    %c0_12 = arith.constant 0 : index
    %15 = vector.load %arg6[%c0_11, %c0_12] : memref<1x128xi32, #tpu.memory_space<vmem>>, vector<1x128xi32>
    %16 = tpu.iota {dimensions = array<i32: 0>} : vector<128x1xi32>
    %c16_i32 = arith.constant 16 : i32
    %17 = vector.broadcast %c16_i32 : i32 to vector<128x1xi32>
    %18 = arith.cmpi slt, %16, %17 : vector<128x1xi32>
    %19 = vector.broadcast %14 : vector<128x1xi32> to vector<128x128xi32>
    %20 = vector.broadcast %15 : vector<1x128xi32> to vector<128x128xi32>
    %21 = arith.cmpi eq, %19, %20 : vector<128x128xi32>
    %22 = vector.broadcast %18 : vector<128x1xi1> to vector<128x128xi1>
    %23 = arith.andi %21, %22 : vector<128x128xi1>
    %cst_13 = arith.constant dense<true> : vector<128x128xi1>
    %24 = arith.xori %21, %cst_13 : vector<128x128xi1>
    %25 = vector.broadcast %18 : vector<128x1xi1> to vector<128x128xi1>
    %26 = arith.andi %24, %25 : vector<128x128xi1>
    %cst_14 = arith.constant 1.000000e+00 : f32
    %27 = vector.broadcast %cst_14 : f32 to vector<128x128xf32>
    %28 = arith.mulf %27, %13 : vector<128x128xf32>
    %cst_15 = arith.constant 0.000000e+00 : f32
    %29 = vector.broadcast %cst_15 : f32 to vector<128x128xf32>
    %30 = arith.subf %29, %28 : vector<128x128xf32>
    %31 = math.exp %30 : vector<128x128xf32>
    %cst_16 = arith.constant 0.000000e+00 : f32
    %32 = vector.broadcast %cst_16 : f32 to vector<128x128xf32>
    %33 = arith.select %23, %31, %32 : vector<128x128xi1>, vector<128x128xf32>
    %cst_17 = arith.constant dense<0.000000e+00> : vector<128xf32>
    %34 = vector.multi_reduction <add>, %33, %cst_17 [0] : vector<128x128xf32> to vector<128xf32>
    %35 = vector.shape_cast %34 : vector<128xf32> to vector<1x128xf32>
    %36 = math.log %35 : vector<1x128xf32>
    %cst_18 = arith.constant -1.000000e+00 : f32
    %37 = vector.broadcast %cst_18 : f32 to vector<1x128xf32>
    %38 = arith.mulf %36, %37 : vector<1x128xf32>
    %cst_19 = arith.constant 0xFF800000 : f32
    %39 = vector.broadcast %cst_19 : f32 to vector<128x128xf32>
    %40 = arith.select %26, %28, %39 : vector<128x128xi1>, vector<128x128xf32>
    %cst_20 = arith.constant dense<0xFF800000> : vector<128xf32>
    %41 = vector.multi_reduction <maximumf>, %40, %cst_20 [0] : vector<128x128xf32> to vector<128xf32>
    %42 = vector.shape_cast %41 : vector<128xf32> to vector<1x128xf32>
    %43 = vector.broadcast %42 : vector<1x128xf32> to vector<128x128xf32>
    %44 = arith.subf %40, %43 : vector<128x128xf32>
    %45 = math.exp %44 : vector<128x128xf32>
    %cst_21 = arith.constant dense<0.000000e+00> : vector<128xf32>
    %46 = vector.multi_reduction <add>, %45, %cst_21 [0] : vector<128x128xf32> to vector<128xf32>
    %47 = vector.shape_cast %46 : vector<128xf32> to vector<1x128xf32>
    %48 = math.log %47 : vector<1x128xf32>
    %49 = arith.addf %42, %48 : vector<1x128xf32>
    %cst_22 = arith.constant 1.000000e+00 : f32
    %50 = vector.broadcast %cst_22 : f32 to vector<1x128xf32>
    %51 = arith.mulf %49, %50 : vector<1x128xf32>
    %52 = arith.subf %38, %51 : vector<1x128xf32>
    %cst_23 = arith.constant 3.000000e-01 : f32
    %53 = vector.broadcast %cst_23 : f32 to vector<1x128xf32>
    %54 = arith.addf %52, %53 : vector<1x128xf32>
    %cst_24 = arith.constant 0.000000e+00 : f32
    %55 = vector.broadcast %cst_24 : f32 to vector<1x128xf32>
    %56 = arith.maximumf %54, %55 : vector<1x128xf32>
    %c0_25 = arith.constant 0 : index
    %c0_26 = arith.constant 0 : index
    %57 = vector.load %arg7[%c0_25, %c0_26] : memref<1x128xf32, #tpu.memory_space<vmem>>, vector<1x128xf32>
    tpu.vector_store %arg7[%c0_25, %c0_26], %56 {strides = array<i32>} : memref<1x128xf32, #tpu.memory_space<vmem>>, vector<1x128xf32>,
    return
  }
  func.func @transform_0(%arg0: i32) -> (i32, i32) {
    %c0_i32 = arith.constant 0 : i32
    %c0_i32_0 = arith.constant 0 : i32
    %c0_i32_1 = arith.constant 0 : i32
    return %c0_i32, %c0_i32_0 : i32, i32
  }
  func.func @transform_1(%arg0: i32) -> (i32, i32) {
    %c0_i32 = arith.constant 0 : i32
    %c0_i32_0 = arith.constant 0 : i32
    return %arg0, %c0_i32 : i32, i32
  }
  func.func @transform_2(%arg0: i32) -> (i32, i32) {
    %c0_i32 = arith.constant 0 : i32
    %c0_i32_0 = arith.constant 0 : i32
    %c0_i32_1 = arith.constant 0 : i32
    return %c0_i32, %c0_i32_0 : i32, i32
  }
  func.func @transform_3(%arg0: i32) -> (i32, i32) {
    %c0_i32 = arith.constant 0 : i32
    %c0_i32_0 = arith.constant 0 : i32
    return %c0_i32, %arg0 : i32, i32
  }
  func.func @transform_4(%arg0: i32) -> (i32, i32) {
    %c0_i32 = arith.constant 0 : i32
    %c0_i32_0 = arith.constant 0 : i32
    %c0_i32_1 = arith.constant 0 : i32
    return %c0_i32, %c0_i32_0 : i32, i32
  }
  func.func @transform_5(%arg0: i32) -> (i32, i32) {
    %c0_i32 = arith.constant 0 : i32
    %c0_i32_0 = arith.constant 0 : i32
    return %c0_i32, %arg0 : i32, i32
  }
  func.func @transform_6(%arg0: i32) -> (i32, i32) {
    %c0_i32 = arith.constant 0 : i32
    %c0_i32_0 = arith.constant 0 : i32
    return %c0_i32, %arg0 : i32, i32
  }
}

</mosaic_0001>

<llo_original>
// kernel: tpu_custom_call.1
$region0: #{tpu_custom_call.1}
  #allocation0 [shape = 'u32[]', space=smem, size = 0x4, offset = 0x4, fixed_abs, tag = 'smem constant byte address 0x4 - core index']
  #allocation1 [shape = 'u32[144,128]{1,0:T(1,128)}', space=vmem, size = 0x12000, scoped, tag = 'internal scratch']
  %s0 = inlined_call_operand.vmem [shape: bf16[128,32], index: 0, kind: input, shape index: {}]
  %s1 = inlined_call_operand.vmem [shape: bf16[128,32], index: 1, kind: input, shape index: {}]
  %s2 = inlined_call_operand.vmem [shape: f32[128,1], index: 2, kind: input, shape index: {}]
  %s3 = inlined_call_operand.vmem [shape: f32[1,128], index: 3, kind: input, shape index: {}]
  %s4 = inlined_call_operand.vmem [shape: s32[128,1], index: 4, kind: input, shape index: {}]
  %s5 = inlined_call_operand.vmem [shape: s32[1,128], index: 5, kind: input, shape index: {}]
  %s6 = inlined_call_operand.hbm [shape: f32[1,128], index: 6, kind: output, shape index: {}]
  %s7 = sld [smem:[#allocation0]]
  $region34: #{tpu_custom_call.1} parent=0
    _
  %s9 = ssub.s32 1, %s7
  %s10 = scalar_select 0, %s9, %s7
  $region1: #{tpu_custom_call.1} parent=0
    #allocation2 [shape = 'u8[512]{0}', space=vmem, size = 0x400, scoped, tag = 'output window, operand 0, single buffered']
    #allocation3 [shape = 's32[1]{0}', space=sflag, size = 0x4, scoped, tag = 'scoped memory for tpu_custom_call.1']
    %11 = vsyncpa [#allocation3], 0
    // Predicated region
    $region2: #{tpu_custom_call.1} parent=1 // pred_check
      _
    $region3: #{tpu_custom_call.1} parent=1 // pred_check_branch
      %13 = sbr.rel (0) target = $region5
    $region4: #{tpu_custom_call.1} parent=1 // pred_region
      _
    $region5: #{tpu_custom_call.1} parent=1 // pred_fallthru
      _
    // Predicated region
    $region6: #{tpu_custom_call.1} parent=1 // pred_check
      _
    $region7: #{tpu_custom_call.1} parent=1 // pred_check_branch
      %15 = sbr.rel (0) target = $region9
    $region8: #{tpu_custom_call.1} parent=1 // pred_region
      _
    $region9: #{tpu_custom_call.1} parent=1 // pred_fallthru
      _
    // Predicated region
    $region10: #{tpu_custom_call.1} parent=1 // pred_check
      _
    $region11: #{tpu_custom_call.1} parent=1 // pred_check_branch
      %17 = sbr.rel (0) target = $region13
    $region12: #{tpu_custom_call.1} parent=1 // pred_region
      _
    $region13: #{tpu_custom_call.1} parent=1 // pred_fallthru
      _
    // Predicated region
    $region14: #{tpu_custom_call.1} parent=1 // pred_check
      _
    $region15: #{tpu_custom_call.1} parent=1 // pred_check_branch
      %19 = sbr.rel (0) target = $region17
    $region16: #{tpu_custom_call.1} parent=1 // pred_region
      _
    $region17: #{tpu_custom_call.1} parent=1 // pred_fallthru
      _
    // Predicated region
    $region18: #{tpu_custom_call.1} parent=1 // pred_check
      _
    $region19: #{tpu_custom_call.1} parent=1 // pred_check_branch
      %21 = sbr.rel (0) target = $region21
    $region20: #{tpu_custom_call.1} parent=1 // pred_region
      _
    $region21: #{tpu_custom_call.1} parent=1 // pred_fallthru
      _
    // Predicated region
    $region22: #{tpu_custom_call.1} parent=1 // pred_check
      _
    $region23: #{tpu_custom_call.1} parent=1 // pred_check_branch
      %23 = sbr.rel (0) target = $region25
    $region24: #{tpu_custom_call.1} parent=1 // pred_region
      _
    $region25: #{tpu_custom_call.1} parent=1 // pred_fallthru
      _
    %v26 = vld [vmem:[%s0] sm:$0xf]
    %v27 = vld [vmem:[%s0 + $0x4] sm:$0xf]
    %v28 = vld [vmem:[%s0 + $0x8] sm:$0xf]
    %v29 = vld [vmem:[%s0 + $0xc] sm:$0xf]
    %v30 = vld [vmem:[%s0 + $0x10] sm:$0xf]
    %v31 = vld [vmem:[%s0 + $0x14] sm:$0xf]
    %v32 = vld [vmem:[%s0 + $0x18] sm:$0xf]
    %v33 = vld [vmem:[%s0 + $0x1c] sm:$0xf]
    %v34 = vld [vmem:[%s0 + $0x20] sm:$0xf]
    %v35 = vld [vmem:[%s0 + $0x24] sm:$0xf]
    %v36 = vld [vmem:[%s0 + $0x28] sm:$0xf]
    %v37 = vld [vmem:[%s0 + $0x2c] sm:$0xf]
    %v38 = vld [vmem:[%s0 + $0x30] sm:$0xf]
    %v39 = vld [vmem:[%s0 + $0x34] sm:$0xf]
    %v40 = vld [vmem:[%s0 + $0x38] sm:$0xf]
    %v41 = vld [vmem:[%s0 + $0x3c] sm:$0xf]
    %v42 = vld [vmem:[%s1] sm:$0xf]
    %v43 = vld [vmem:[%s1 + $0x4] sm:$0xf]
    %v44 = vld [vmem:[%s1 + $0x8] sm:$0xf]
    %v45 = vld [vmem:[%s1 + $0xc] sm:$0xf]
    %v46 = vld [vmem:[%s1 + $0x10] sm:$0xf]
    %v47 = vld [vmem:[%s1 + $0x14] sm:$0xf]
    %v48 = vld [vmem:[%s1 + $0x18] sm:$0xf]
    %v49 = vld [vmem:[%s1 + $0x1c] sm:$0xf]
    %v50 = vld [vmem:[%s1 + $0x20] sm:$0xf]
    %v51 = vld [vmem:[%s1 + $0x24] sm:$0xf]
    %v52 = vld [vmem:[%s1 + $0x28] sm:$0xf]
    %v53 = vld [vmem:[%s1 + $0x2c] sm:$0xf]
    %v54 = vld [vmem:[%s1 + $0x30] sm:$0xf]
    %v55 = vld [vmem:[%s1 + $0x34] sm:$0xf]
    %v56 = vld [vmem:[%s1 + $0x38] sm:$0xf]
    %v57 = vld [vmem:[%s1 + $0x3c] sm:$0xf]
    %v58 = vmul.bf16 %v42, 1073758208
    %v59 = vmul.bf16 %v43, 1073758208
    %v60 = vmul.bf16 %v44, 1073758208
    %v61 = vmul.bf16 %v45, 1073758208
    %v62 = vmul.bf16 %v46, 1073758208
    %v63 = vmul.bf16 %v47, 1073758208
    %v64 = vmul.bf16 %v48, 1073758208
    %v65 = vmul.bf16 %v49, 1073758208
    %v66 = vmul.bf16 %v50, 1073758208
    %v67 = vmul.bf16 %v51, 1073758208
    %v68 = vmul.bf16 %v52, 1073758208
    %v69 = vmul.bf16 %v53, 1073758208
    %v70 = vmul.bf16 %v54, 1073758208
    %v71 = vmul.bf16 %v55, 1073758208
    %v72 = vmul.bf16 %v56, 1073758208
    %v73 = vmul.bf16 %v57, 1073758208
    %v90 = vunpack.c.l.b16 %v26
    %v91 = vunpack.c.l.b16 %v27
    %v92 = vunpack.c.l.b16 %v28
    %v93 = vunpack.c.l.b16 %v29
    %v94 = vunpack.c.l.b16 %v30
    %v95 = vunpack.c.l.b16 %v31
    %v96 = vunpack.c.l.b16 %v32
    %v97 = vunpack.c.l.b16 %v33
    %v98 = vunpack.c.l.b16 %v34
    %v99 = vunpack.c.l.b16 %v35
    %v100 = vunpack.c.l.b16 %v36
    %v101 = vunpack.c.l.b16 %v37
    %v102 = vunpack.c.l.b16 %v38
    %v103 = vunpack.c.l.b16 %v39
    %v104 = vunpack.c.l.b16 %v40
    %v105 = vunpack.c.l.b16 %v41
    %v106 = vpack.c.b16 %v91, %v90
    %v107 = vpack.c.b16 %v93, %v92
    %v108 = vpack.c.b16 %v95, %v94
    %v109 = vpack.c.b16 %v97, %v96
    %v110 = vpack.c.b16 %v99, %v98
    %v111 = vpack.c.b16 %v101, %v100
    %v112 = vpack.c.b16 %v103, %v102
    %v113 = vpack.c.b16 %v105, %v104
    %v130 = vunpack.c.l.b16 %v58
    %v131 = vunpack.c.l.b16 %v59
    %v132 = vunpack.c.l.b16 %v60
    %v133 = vunpack.c.l.b16 %v61
    %v134 = vunpack.c.l.b16 %v62
    %v135 = vunpack.c.l.b16 %v63
    %v136 = vunpack.c.l.b16 %v64
    %v137 = vunpack.c.l.b16 %v65
    %v138 = vunpack.c.l.b16 %v66
    %v139 = vunpack.c.l.b16 %v67
    %v140 = vunpack.c.l.b16 %v68
    %v141 = vunpack.c.l.b16 %v69
    %v142 = vunpack.c.l.b16 %v70
    %v143 = vunpack.c.l.b16 %v71
    %v144 = vunpack.c.l.b16 %v72
    %v145 = vunpack.c.l.b16 %v73
    %v146 = vpack.c.b16 %v131, %v130
    %v147 = vpack.c.b16 %v133, %v132
    %v148 = vpack.c.b16 %v135, %v134
    %v149 = vpack.c.b16 %v137, %v136
    %v150 = vpack.c.b16 %v139, %v138
    %v151 = vpack.c.b16 %v141, %v140
    %v152 = vpack.c.b16 %v143, %v142
    %v153 = vpack.c.b16 %v145, %v144
    %vm154 = vcmask 261120
    %v156 = vsel %vm154, %v106, 0
    %v159 = vsel %vm154, %v107, 0
    %v162 = vsel %vm154, %v108, 0
    %v165 = vsel %vm154, %v109, 0
    %v168 = vsel %vm154, %v110, 0
    %v171 = vsel %vm154, %v111, 0
    %v174 = vsel %vm154, %v112, 0
    %v177 = vsel %vm154, %v113, 0
    %v180 = vsel %vm154, %v146, 0
    %v183 = vsel %vm154, %v147, 0
    %v186 = vsel %vm154, %v148, 0
    %v189 = vsel %vm154, %v149, 0
    %v192 = vsel %vm154, %v150, 0
    %v195 = vsel %vm154, %v151, 0
    %v198 = vsel %vm154, %v152, 0
    %v201 = vsel %vm154, %v153, 0
    %203 = vmatprep.subr.bf16.mxu0 0
    %204 = vmatpush1.bf16.xpose.msra.mxu0 %v180
    %205 = vmatprep.subr.bf16.mxu0 0
    %206 = vmatpush1.bf16.xpose.msra.mxu0 %v183
    %207 = vmatprep.subr.bf16.mxu0 0
    %208 = vmatpush1.bf16.xpose.msra.mxu0 %v186
    %209 = vmatprep.subr.bf16.mxu0 0
    %210 = vmatpush1.bf16.xpose.msra.mxu0 %v189
    %211 = vmatprep.subr.bf16.mxu0 0
    %212 = vmatpush1.bf16.xpose.msra.mxu0 %v192
    %213 = vmatprep.subr.bf16.mxu0 0
    %214 = vmatpush1.bf16.xpose.msra.mxu0 %v195
    %215 = vmatprep.subr.bf16.mxu0 0
    %216 = vmatpush1.bf16.xpose.msra.mxu0 %v198
    %217 = vmatprep.subr.bf16.mxu0 0
    %218 = vmatpush1.bf16.xpose.msra.mxu0 %v201
    %219 = vmatprep.subr.bf16.mxu0 0
    %220 = vmatpush1.bf16.xpose.msra.mxu0 0
    %221 = vmatprep.subr.bf16.mxu0 0
    %222 = vmatpush1.bf16.xpose.msra.mxu0 0
    %223 = vmatprep.subr.bf16.mxu0 0
    %224 = vmatpush1.bf16.xpose.msra.mxu0 0
    %225 = vmatprep.subr.bf16.mxu0 0
    %226 = vmatpush1.bf16.xpose.msra.mxu0 0
    %227 = vmatprep.subr.bf16.mxu0 0
    %228 = vmatpush1.bf16.xpose.msra.mxu0 0
    %229 = vmatprep.subr.bf16.mxu0 0
    %230 = vmatpush1.bf16.xpose.msra.mxu0 0
    %231 = vmatprep.subr.bf16.mxu0 0
    %232 = vmatpush1.bf16.xpose.msra.mxu0 0
    %233 = vmatprep.subr.bf16.mxu0 0
    %234 = vmatpush1.bf16.xpose.msra.mxu0 0
    %235 = vmatprep.mubr.bf16.mxu0 0
    %236 = vmatmul.mubr.bf16.gmra.mrb[0].mxu0 %v156
    %v237 = vpop.f32.mrb[0].mxu0
    %v238 = vadd.f32 0.0, %v237
    %v239 = vpop.f32.mrb[0].mxu0
    %v240 = vpop.f32.mrb[0].mxu0
    %v241 = vadd.f32 0.0, %v240
    %v242 = vpop.f32.mrb[0].mxu0
    %243 = vmatprep.mubr.bf16.mxu0 0
    %244 = vmatmul.mubr.bf16.gmra.mrb[0].mxu0 %v159
    %v245 = vpop.f32.mrb[0].mxu0
    %v246 = vadd.f32 0.0, %v245
    %v247 = vpop.f32.mrb[0].mxu0
    %v248 = vpop.f32.mrb[0].mxu0
    %v249 = vadd.f32 0.0, %v248
    %v250 = vpop.f32.mrb[0].mxu0
    %251 = vmatprep.mubr.bf16.mxu0 0
    %252 = vmatmul.mubr.bf16.gmra.mrb[0].mxu0 %v162
    %v253 = vpop.f32.mrb[0].mxu0
    %v254 = vadd.f32 0.0, %v253
    %v255 = vpop.f32.mrb[0].mxu0
    %v256 = vpop.f32.mrb[0].mxu0
    %v257 = vadd.f32 0.0, %v256
    %v258 = vpop.f32.mrb[0].mxu0
    %259 = vmatprep.mubr.bf16.mxu0 0
    %260 = vmatmul.mubr.bf16.gmra.mrb[0].mxu0 %v165
    %v261 = vpop.f32.mrb[0].mxu0
    %v262 = vadd.f32 0.0, %v261
    %v263 = vpop.f32.mrb[0].mxu0
    %v264 = vpop.f32.mrb[0].mxu0
    %v265 = vadd.f32 0.0, %v264
    %v266 = vpop.f32.mrb[0].mxu0
    %267 = vmatprep.mubr.bf16.mxu0 0
    %268 = vmatmul.mubr.bf16.gmra.mrb[0].mxu0 %v168
    %v269 = vpop.f32.mrb[0].mxu0
    %v270 = vadd.f32 0.0, %v269
    %v271 = vpop.f32.mrb[0].mxu0
    %v272 = vpop.f32.mrb[0].mxu0
    %v273 = vadd.f32 0.0, %v272
    %v274 = vpop.f32.mrb[0].mxu0
    %275 = vmatprep.mubr.bf16.mxu0 0
    %276 = vmatmul.mubr.bf16.gmra.mrb[0].mxu0 %v171
    %v277 = vpop.f32.mrb[0].mxu0
    %v278 = vadd.f32 0.0, %v277
    %v279 = vpop.f32.mrb[0].mxu0
    %v280 = vpop.f32.mrb[0].mxu0
    %v281 = vadd.f32 0.0, %v280
    %v282 = vpop.f32.mrb[0].mxu0
    %283 = vmatprep.mubr.bf16.mxu0 0
    %284 = vmatmul.mubr.bf16.gmra.mrb[0].mxu0 %v174
    %v285 = vpop.f32.mrb[0].mxu0
    %v286 = vadd.f32 0.0, %v285
    %v287 = vpop.f32.mrb[0].mxu0
    %v288 = vpop.f32.mrb[0].mxu0
    %v289 = vadd.f32 0.0, %v288
    %v290 = vpop.f32.mrb[0].mxu0
    %291 = vmatprep.mubr.bf16.mxu0 0
    %292 = vmatmul.mubr.bf16.gmra.mrb[0].mxu0 %v177
    %v293 = vpop.f32.mrb[0].mxu0
    %v294 = vadd.f32 0.0, %v293
    %v295 = vpop.f32.mrb[0].mxu0
    %v296 = vpop.f32.mrb[0].mxu0
    %v297 = vadd.f32 0.0, %v296
    %v298 = vpop.f32.mrb[0].mxu0
    %299 = vdwg.mxu0
    %v300 = vld [vmem:[%s2] sm:$0xff]
    %v301 = vld [vmem:[%s2 + $0x8] sm:$0xff]
    %v302 = vld [vmem:[%s2 + $0x10] sm:$0xff]
    %v303 = vld [vmem:[%s2 + $0x18] sm:$0xff]
    %v304 = vld [vmem:[%s2 + $0x20] sm:$0xff]
    %v305 = vld [vmem:[%s2 + $0x28] sm:$0xff]
    %v306 = vld [vmem:[%s2 + $0x30] sm:$0xff]
    %v307 = vld [vmem:[%s2 + $0x38] sm:$0xff]
    %v308 = vld [vmem:[%s2 + $0x40] sm:$0xff]
    %v309 = vld [vmem:[%s2 + $0x48] sm:$0xff]
    %v310 = vld [vmem:[%s2 + $0x50] sm:$0xff]
    %v311 = vld [vmem:[%s2 + $0x58] sm:$0xff]
    %v312 = vld [vmem:[%s2 + $0x60] sm:$0xff]
    %v313 = vld [vmem:[%s2 + $0x68] sm:$0xff]
    %v314 = vld [vmem:[%s2 + $0x70] sm:$0xff]
    %v315 = vld [vmem:[%s2 + $0x78] sm:$0xff]
    %v316 = vld [vmem:[%s3] sm:$0x1]
    %318 = vset.pattern.permute.xlu0 0
    %319 = vperm.xlu0 %318, %v300
    %v320 = vpop.permute.xlu0 %319
    %323 = vset.pattern.permute.xlu0 0
    %324 = vperm.xlu0 %323, %v301
    %v325 = vpop.permute.xlu0 %324
    %328 = vset.pattern.permute.xlu0 0
    %329 = vperm.xlu0 %328, %v302
    %v330 = vpop.permute.xlu0 %329
    %333 = vset.pattern.permute.xlu0 0
    %334 = vperm.xlu0 %333, %v303
    %v335 = vpop.permute.xlu0 %334
    %338 = vset.pattern.permute.xlu0 0
    %339 = vperm.xlu0 %338, %v304
    %v340 = vpop.permute.xlu0 %339
    %343 = vset.pattern.permute.xlu0 0
    %344 = vperm.xlu0 %343, %v305
    %v345 = vpop.permute.xlu0 %344
    %348 = vset.pattern.permute.xlu0 0
    %349 = vperm.xlu0 %348, %v306
    %v350 = vpop.permute.xlu0 %349
    %353 = vset.pattern.permute.xlu0 0
    %354 = vperm.xlu0 %353, %v307
    %v355 = vpop.permute.xlu0 %354
    %358 = vset.pattern.permute.xlu0 0
    %359 = vperm.xlu0 %358, %v308
    %v360 = vpop.permute.xlu0 %359
    %363 = vset.pattern.permute.xlu0 0
    %364 = vperm.xlu0 %363, %v309
    %v365 = vpop.permute.xlu0 %364
    %368 = vset.pattern.permute.xlu0 0
    %369 = vperm.xlu0 %368, %v310
    %v370 = vpop.permute.xlu0 %369
    %373 = vset.pattern.permute.xlu0 0
    %374 = vperm.xlu0 %373, %v311
    %v375 = vpop.permute.xlu0 %374
    %378 = vset.pattern.permute.xlu0 0
    %379 = vperm.xlu0 %378, %v312
    %v380 = vpop.permute.xlu0 %379
    %383 = vset.pattern.permute.xlu0 0
    %384 = vperm.xlu0 %383, %v313
    %v385 = vpop.permute.xlu0 %384
    %388 = vset.pattern.permute.xlu0 0
    %389 = vperm.xlu0 %388, %v314
    %v390 = vpop.permute.xlu0 %389
    %393 = vset.pattern.permute.xlu0 0
    %394 = vperm.xlu0 %393, %v315
    %v395 = vpop.permute.xlu0 %394
    %v398 = vlaneseq
    %v399 = vshrl.u32 %v398, 7
    %v400 = vsub.s32 0, %v399
    %v401 = vrot.slane %v316, %v400
    %v403 = vadd.f32 %v320, %v401
    %v404 = vadd.f32 %v325, %v401
    %v405 = vadd.f32 %v330, %v401
    %v406 = vadd.f32 %v335, %v401
    %v407 = vadd.f32 %v340, %v401
    %v408 = vadd.f32 %v345, %v401
    %v409 = vadd.f32 %v350, %v401
    %v410 = vadd.f32 %v355, %v401
    %v411 = vadd.f32 %v360, %v401
    %v412 = vadd.f32 %v365, %v401
    %v413 = vadd.f32 %v370, %v401
    %v414 = vadd.f32 %v375, %v401
    %v415 = vadd.f32 %v380, %v401
    %v416 = vadd.f32 %v385, %v401
    %v417 = vadd.f32 %v390, %v401
    %v418 = vadd.f32 %v395, %v401
    %v419 = vsub.f32 %v403, %v238
    %v420 = vsub.f32 %v404, %v241
    %v421 = vsub.f32 %v405, %v246
    %v422 = vsub.f32 %v406, %v249
    %v423 = vsub.f32 %v407, %v254
    %v424 = vsub.f32 %v408, %v257
    %v425 = vsub.f32 %v409, %v262
    %v426 = vsub.f32 %v410, %v265
    %v427 = vsub.f32 %v411, %v270
    %v428 = vsub.f32 %v412, %v273
    %v429 = vsub.f32 %v413, %v278
    %v430 = vsub.f32 %v414, %v281
    %v431 = vsub.f32 %v415, %v286
    %v432 = vsub.f32 %v416, %v289
    %v433 = vsub.f32 %v417, %v294
    %v434 = vsub.f32 %v418, %v297
    %v435 = vmax.f32 %v419, 1e-12
    %v436 = vmax.f32 %v420, 1e-12
    %v437 = vmax.f32 %v421, 1e-12
    %v438 = vmax.f32 %v422, 1e-12
    %v439 = vmax.f32 %v423, 1e-12
    %v440 = vmax.f32 %v424, 1e-12
    %v441 = vmax.f32 %v425, 1e-12
    %v442 = vmax.f32 %v426, 1e-12
    %v443 = vmax.f32 %v427, 1e-12
    %v444 = vmax.f32 %v428, 1e-12
    %v445 = vmax.f32 %v429, 1e-12
    %v446 = vmax.f32 %v430, 1e-12
    %v447 = vmax.f32 %v431, 1e-12
    %v448 = vmax.f32 %v432, 1e-12
    %v449 = vmax.f32 %v433, 1e-12
    %v450 = vmax.f32 %v434, 1e-12
    %v451 = vrsqrt.pop %v435
    %v452 = vmul.f32 %v435, %v451
    %vm453 = vcmp.eq.f32.partialorder %v435, inf
    %v454 = vsel %vm453, %v435, %v452
    %vm455 = vcmp.eq.f32.partialorder %v435, 0.0
    %v456 = vand.u32 %v435, 2147483648
    %v457 = vsel %vm455, %v456, %v454
    %v458 = vrsqrt.pop %v436
    %v459 = vmul.f32 %v436, %v458
    %vm460 = vcmp.eq.f32.partialorder %v436, inf
    %v461 = vsel %vm460, %v436, %v459
    %vm462 = vcmp.eq.f32.partialorder %v436, 0.0
    %v463 = vand.u32 %v436, 2147483648
    %v464 = vsel %vm462, %v463, %v461
    %v465 = vrsqrt.pop %v437
    %v466 = vmul.f32 %v437, %v465
    %vm467 = vcmp.eq.f32.partialorder %v437, inf
    %v468 = vsel %vm467, %v437, %v466
    %vm469 = vcmp.eq.f32.partialorder %v437, 0.0
    %v470 = vand.u32 %v437, 2147483648
    %v471 = vsel %vm469, %v470, %v468
    %v472 = vrsqrt.pop %v438
    %v473 = vmul.f32 %v438, %v472
    %vm474 = vcmp.eq.f32.partialorder %v438, inf
    %v475 = vsel %vm474, %v438, %v473
    %vm476 = vcmp.eq.f32.partialorder %v438, 0.0
    %v477 = vand.u32 %v438, 2147483648
    %v478 = vsel %vm476, %v477, %v475
    %v479 = vrsqrt.pop %v439
    %v480 = vmul.f32 %v439, %v479
    %vm481 = vcmp.eq.f32.partialorder %v439, inf
    %v482 = vsel %vm481, %v439, %v480
    %vm483 = vcmp.eq.f32.partialorder %v439, 0.0
    %v484 = vand.u32 %v439, 2147483648
    %v485 = vsel %vm483, %v484, %v482
    %v486 = vrsqrt.pop %v440
    %v487 = vmul.f32 %v440, %v486
    %vm488 = vcmp.eq.f32.partialorder %v440, inf
    %v489 = vsel %vm488, %v440, %v487
    %vm490 = vcmp.eq.f32.partialorder %v440, 0.0
    %v491 = vand.u32 %v440, 2147483648
    %v492 = vsel %vm490, %v491, %v489
    %v493 = vrsqrt.pop %v441
    %v494 = vmul.f32 %v441, %v493
    %vm495 = vcmp.eq.f32.partialorder %v441, inf
    %v496 = vsel %vm495, %v441, %v494
    %vm497 = vcmp.eq.f32.partialorder %v441, 0.0
    %v498 = vand.u32 %v441, 2147483648
    %v499 = vsel %vm497, %v498, %v496
    %v500 = vrsqrt.pop %v442
    %v501 = vmul.f32 %v442, %v500
    %vm502 = vcmp.eq.f32.partialorder %v442, inf
    %v503 = vsel %vm502, %v442, %v501
    %vm504 = vcmp.eq.f32.partialorder %v442, 0.0
    %v505 = vand.u32 %v442, 2147483648
    %v506 = vsel %vm504, %v505, %v503
    %v507 = vrsqrt.pop %v443
    %v508 = vmul.f32 %v443, %v507
    %vm509 = vcmp.eq.f32.partialorder %v443, inf
    %v510 = vsel %vm509, %v443, %v508
    %vm511 = vcmp.eq.f32.partialorder %v443, 0.0
    %v512 = vand.u32 %v443, 2147483648
    %v513 = vsel %vm511, %v512, %v510
    %v514 = vrsqrt.pop %v444
    %v515 = vmul.f32 %v444, %v514
    %vm516 = vcmp.eq.f32.partialorder %v444, inf
    %v517 = vsel %vm516, %v444, %v515
    %vm518 = vcmp.eq.f32.partialorder %v444, 0.0
    %v519 = vand.u32 %v444, 2147483648
    %v520 = vsel %vm518, %v519, %v517
    %v521 = vrsqrt.pop %v445
    %v522 = vmul.f32 %v445, %v521
    %vm523 = vcmp.eq.f32.partialorder %v445, inf
    %v524 = vsel %vm523, %v445, %v522
    %vm525 = vcmp.eq.f32.partialorder %v445, 0.0
    %v526 = vand.u32 %v445, 2147483648
    %v527 = vsel %vm525, %v526, %v524
    %v528 = vrsqrt.pop %v446
    %v529 = vmul.f32 %v446, %v528
    %vm530 = vcmp.eq.f32.partialorder %v446, inf
    %v531 = vsel %vm530, %v446, %v529
    %vm532 = vcmp.eq.f32.partialorder %v446, 0.0
    %v533 = vand.u32 %v446, 2147483648
    %v534 = vsel %vm532, %v533, %v531
    %v535 = vrsqrt.pop %v447
    %v536 = vmul.f32 %v447, %v535
    %vm537 = vcmp.eq.f32.partialorder %v447, inf
    %v538 = vsel %vm537, %v447, %v536
    %vm539 = vcmp.eq.f32.partialorder %v447, 0.0
    %v540 = vand.u32 %v447, 2147483648
    %v541 = vsel %vm539, %v540, %v538
    %v542 = vrsqrt.pop %v448
    %v543 = vmul.f32 %v448, %v542
    %vm544 = vcmp.eq.f32.partialorder %v448, inf
    %v545 = vsel %vm544, %v448, %v543
    %vm546 = vcmp.eq.f32.partialorder %v448, 0.0
    %v547 = vand.u32 %v448, 2147483648
    %v548 = vsel %vm546, %v547, %v545
    %v549 = vrsqrt.pop %v449
    %v550 = vmul.f32 %v449, %v549
    %vm551 = vcmp.eq.f32.partialorder %v449, inf
    %v552 = vsel %vm551, %v449, %v550
    %vm553 = vcmp.eq.f32.partialorder %v449, 0.0
    %v554 = vand.u32 %v449, 2147483648
    %v555 = vsel %vm553, %v554, %v552
    %v556 = vrsqrt.pop %v450
    %v557 = vmul.f32 %v450, %v556
    %vm558 = vcmp.eq.f32.partialorder %v450, inf
    %v559 = vsel %vm558, %v450, %v557
    %vm560 = vcmp.eq.f32.partialorder %v450, 0.0
    %v561 = vand.u32 %v450, 2147483648
    %v562 = vsel %vm560, %v561, %v559
    %v563 = vld [vmem:[%s4] sm:$0xff]
    %v564 = vld [vmem:[%s4 + $0x8] sm:$0xff]
    %v565 = vld [vmem:[%s4 + $0x10] sm:$0xff]
    %v566 = vld [vmem:[%s4 + $0x18] sm:$0xff]
    %v567 = vld [vmem:[%s4 + $0x20] sm:$0xff]
    %v568 = vld [vmem:[%s4 + $0x28] sm:$0xff]
    %v569 = vld [vmem:[%s4 + $0x30] sm:$0xff]
    %v570 = vld [vmem:[%s4 + $0x38] sm:$0xff]
    %v571 = vld [vmem:[%s4 + $0x40] sm:$0xff]
    %v572 = vld [vmem:[%s4 + $0x48] sm:$0xff]
    %v573 = vld [vmem:[%s4 + $0x50] sm:$0xff]
    %v574 = vld [vmem:[%s4 + $0x58] sm:$0xff]
    %v575 = vld [vmem:[%s4 + $0x60] sm:$0xff]
    %v576 = vld [vmem:[%s4 + $0x68] sm:$0xff]
    %v577 = vld [vmem:[%s4 + $0x70] sm:$0xff]
    %v578 = vld [vmem:[%s4 + $0x78] sm:$0xff]
    %v579 = vld [vmem:[%s5] sm:$0x1]
    %v580 = vlaneseq
    %v581 = vshrl.u32 %v580, 7
    %v582 = vadd.s32 %v581, 8
    %v583 = vadd.s32 %v581, 16
    %v584 = vadd.s32 %v581, 24
    %v585 = vadd.s32 %v581, 32
    %v586 = vadd.s32 %v581, 40
    %v587 = vadd.s32 %v581, 48
    %v588 = vadd.s32 %v581, 56
    %v589 = vadd.s32 %v581, 64
    %v590 = vadd.s32 %v581, 72
    %v591 = vadd.s32 %v581, 80
    %v592 = vadd.s32 %v581, 88
    %v593 = vadd.s32 %v581, 96
    %v594 = vadd.s32 %v581, 104
    %v595 = vadd.s32 %v581, 112
    %v596 = vadd.s32 %v581, 120
    %vm597 = vcmp.lt.s32.totalorder %v581, 16
    %vm598 = vcmp.lt.s32.totalorder %v582, 16
    %vm599 = vcmp.lt.s32.totalorder %v583, 16
    %vm600 = vcmp.lt.s32.totalorder %v584, 16
    %vm601 = vcmp.lt.s32.totalorder %v585, 16
    %vm602 = vcmp.lt.s32.totalorder %v586, 16
    %vm603 = vcmp.lt.s32.totalorder %v587, 16
    %vm604 = vcmp.lt.s32.totalorder %v588, 16
    %vm605 = vcmp.lt.s32.totalorder %v589, 16
    %vm606 = vcmp.lt.s32.totalorder %v590, 16
    %vm607 = vcmp.lt.s32.totalorder %v591, 16
    %vm608 = vcmp.lt.s32.totalorder %v592, 16
    %vm609 = vcmp.lt.s32.totalorder %v593, 16
    %vm610 = vcmp.lt.s32.totalorder %v594, 16
    %vm611 = vcmp.lt.s32.totalorder %v595, 16
    %vm612 = vcmp.lt.s32.totalorder %v596, 16
    %613 = vset.pattern.permute.xlu0 0
    %614 = vperm.xlu0 %613, %v563
    %v615 = vpop.permute.xlu0 %614
    %616 = vset.pattern.permute.xlu0 0
    %617 = vperm.xlu0 %616, %v564
    %v618 = vpop.permute.xlu0 %617
    %619 = vset.pattern.permute.xlu0 0
    %620 = vperm.xlu0 %619, %v565
    %v621 = vpop.permute.xlu0 %620
    %622 = vset.pattern.permute.xlu0 0
    %623 = vperm.xlu0 %622, %v566
    %v624 = vpop.permute.xlu0 %623
    %625 = vset.pattern.permute.xlu0 0
    %626 = vperm.xlu0 %625, %v567
    %v627 = vpop.permute.xlu0 %626
    %628 = vset.pattern.permute.xlu0 0
    %629 = vperm.xlu0 %628, %v568
    %v630 = vpop.permute.xlu0 %629
    %631 = vset.pattern.permute.xlu0 0
    %632 = vperm.xlu0 %631, %v569
    %v633 = vpop.permute.xlu0 %632
    %634 = vset.pattern.permute.xlu0 0
    %635 = vperm.xlu0 %634, %v570
    %v636 = vpop.permute.xlu0 %635
    %637 = vset.pattern.permute.xlu0 0
    %638 = vperm.xlu0 %637, %v571
    %v639 = vpop.permute.xlu0 %638
    %640 = vset.pattern.permute.xlu0 0
    %641 = vperm.xlu0 %640, %v572
    %v642 = vpop.permute.xlu0 %641
    %643 = vset.pattern.permute.xlu0 0
    %644 = vperm.xlu0 %643, %v573
    %v645 = vpop.permute.xlu0 %644
    %646 = vset.pattern.permute.xlu0 0
    %647 = vperm.xlu0 %646, %v574
    %v648 = vpop.permute.xlu0 %647
    %649 = vset.pattern.permute.xlu0 0
    %650 = vperm.xlu0 %649, %v575
    %v651 = vpop.permute.xlu0 %650
    %652 = vset.pattern.permute.xlu0 0
    %653 = vperm.xlu0 %652, %v576
    %v654 = vpop.permute.xlu0 %653
    %655 = vset.pattern.permute.xlu0 0
    %656 = vperm.xlu0 %655, %v577
    %v657 = vpop.permute.xlu0 %656
    %658 = vset.pattern.permute.xlu0 0
    %659 = vperm.xlu0 %658, %v578
    %v660 = vpop.permute.xlu0 %659
    %v661 = vlaneseq
    %v662 = vshrl.u32 %v661, 7
    %v663 = vsub.s32 0, %v662
    %v664 = vrot.slane %v579, %v663
    %vm665 = vcmp.eq.s32.totalorder %v615, %v664
    %vm666 = vcmp.eq.s32.totalorder %v618, %v664
    %vm667 = vcmp.eq.s32.totalorder %v621, %v664
    %vm668 = vcmp.eq.s32.totalorder %v624, %v664
    %vm669 = vcmp.eq.s32.totalorder %v627, %v664
    %vm670 = vcmp.eq.s32.totalorder %v630, %v664
    %vm671 = vcmp.eq.s32.totalorder %v633, %v664
    %vm672 = vcmp.eq.s32.totalorder %v636, %v664
    %vm673 = vcmp.eq.s32.totalorder %v639, %v664
    %vm674 = vcmp.eq.s32.totalorder %v642, %v664
    %vm675 = vcmp.eq.s32.totalorder %v645, %v664
    %vm676 = vcmp.eq.s32.totalorder %v648, %v664
    %vm677 = vcmp.eq.s32.totalorder %v651, %v664
    %vm678 = vcmp.eq.s32.totalorder %v654, %v664
    %vm679 = vcmp.eq.s32.totalorder %v657, %v664
    %vm680 = vcmp.eq.s32.totalorder %v660, %v664
    %v681 = vsel %vm597, 1, 0
    %v682 = vsel %vm598, 1, 0
    %v683 = vsel %vm599, 1, 0
    %v684 = vsel %vm600, 1, 0
    %v685 = vsel %vm601, 1, 0
    %v686 = vsel %vm602, 1, 0
    %v687 = vsel %vm603, 1, 0
    %v688 = vsel %vm604, 1, 0
    %v689 = vsel %vm605, 1, 0
    %v690 = vsel %vm606, 1, 0
    %v691 = vsel %vm607, 1, 0
    %v692 = vsel %vm608, 1, 0
    %v693 = vsel %vm609, 1, 0
    %v694 = vsel %vm610, 1, 0
    %v695 = vsel %vm611, 1, 0
    %v696 = vsel %vm612, 1, 0
    %vm697 = vcmp.eq.s32.totalorder %v681, 1
    %vm698 = vcmp.eq.s32.totalorder %v682, 1
    %vm699 = vcmp.eq.s32.totalorder %v683, 1
    %vm700 = vcmp.eq.s32.totalorder %v684, 1
    %vm701 = vcmp.eq.s32.totalorder %v685, 1
    %vm702 = vcmp.eq.s32.totalorder %v686, 1
    %vm703 = vcmp.eq.s32.totalorder %v687, 1
    %vm704 = vcmp.eq.s32.totalorder %v688, 1
    %vm705 = vcmp.eq.s32.totalorder %v689, 1
    %vm706 = vcmp.eq.s32.totalorder %v690, 1
    %vm707 = vcmp.eq.s32.totalorder %v691, 1
    %vm708 = vcmp.eq.s32.totalorder %v692, 1
    %vm709 = vcmp.eq.s32.totalorder %v693, 1
    %vm710 = vcmp.eq.s32.totalorder %v694, 1
    %vm711 = vcmp.eq.s32.totalorder %v695, 1
    %vm712 = vcmp.eq.s32.totalorder %v696, 1
    %vm713 = vmand %vm665, %vm697
    %vm714 = vmand %vm666, %vm698
    %vm715 = vmand %vm667, %vm699
    %vm716 = vmand %vm668, %vm700
    %vm717 = vmand %vm669, %vm701
    %vm718 = vmand %vm670, %vm702
    %vm719 = vmand %vm671, %vm703
    %vm720 = vmand %vm672, %vm704
    %vm721 = vmand %vm673, %vm705
    %vm722 = vmand %vm674, %vm706
    %vm723 = vmand %vm675, %vm707
    %vm724 = vmand %vm676, %vm708
    %vm725 = vmand %vm677, %vm709
    %vm726 = vmand %vm678, %vm710
    %vm727 = vmand %vm679, %vm711
    %vm728 = vmand %vm680, %vm712
    %vm729 = vmxor %vm665, 1
    %vm730 = vmxor %vm666, 1
    %vm731 = vmxor %vm667, 1
    %vm732 = vmxor %vm668, 1
    %vm733 = vmxor %vm669, 1
    %vm734 = vmxor %vm670, 1
    %vm735 = vmxor %vm671, 1
    %vm736 = vmxor %vm672, 1
    %vm737 = vmxor %vm673, 1
    %vm738 = vmxor %vm674, 1
    %vm739 = vmxor %vm675, 1
    %vm740 = vmxor %vm676, 1
    %vm741 = vmxor %vm677, 1
    %vm742 = vmxor %vm678, 1
    %vm743 = vmxor %vm679, 1
    %vm744 = vmxor %vm680, 1
    %vm745 = vmand %vm729, %vm697
    %vm746 = vmand %vm730, %vm698
    %vm747 = vmand %vm731, %vm699
    %vm748 = vmand %vm732, %vm700
    %vm749 = vmand %vm733, %vm701
    %vm750 = vmand %vm734, %vm702
    %vm751 = vmand %vm735, %vm703
    %vm752 = vmand %vm736, %vm704
    %vm753 = vmand %vm737, %vm705
    %vm754 = vmand %vm738, %vm706
    %vm755 = vmand %vm739, %vm707
    %vm756 = vmand %vm740, %vm708
    %vm757 = vmand %vm741, %vm709
    %vm758 = vmand %vm742, %vm710
    %vm759 = vmand %vm743, %vm711
    %vm760 = vmand %vm744, %vm712
    %v761 = vsub.f32 0.0, %v457
    %v762 = vsub.f32 0.0, %v464
    %v763 = vsub.f32 0.0, %v471
    %v764 = vsub.f32 0.0, %v478
    %v765 = vsub.f32 0.0, %v485
    %v766 = vsub.f32 0.0, %v492
    %v767 = vsub.f32 0.0, %v499
    %v768 = vsub.f32 0.0, %v506
    %v769 = vsub.f32 0.0, %v513
    %v770 = vsub.f32 0.0, %v520
    %v771 = vsub.f32 0.0, %v527
    %v772 = vsub.f32 0.0, %v534
    %v773 = vsub.f32 0.0, %v541
    %v774 = vsub.f32 0.0, %v548
    %v775 = vsub.f32 0.0, %v555
    %v776 = vsub.f32 0.0, %v562
    %v777 = vmul.f32 %v761, 1.442695
    %v778 = vpow.pop %v777
    %v779 = vmul.f32 %v762, 1.442695
    %v780 = vpow.pop %v779
    %v781 = vmul.f32 %v763, 1.442695
    %v782 = vpow.pop %v781
    %v783 = vmul.f32 %v764, 1.442695
    %v784 = vpow.pop %v783
    %v785 = vmul.f32 %v765, 1.442695
    %v786 = vpow.pop %v785
    %v787 = vmul.f32 %v766, 1.442695
    %v788 = vpow.pop %v787
    %v789 = vmul.f32 %v767, 1.442695
    %v790 = vpow.pop %v789
    %v791 = vmul.f32 %v768, 1.442695
    %v792 = vpow.pop %v791
    %v793 = vmul.f32 %v769, 1.442695
    %v794 = vpow.pop %v793
    %v795 = vmul.f32 %v770, 1.442695
    %v796 = vpow.pop %v795
    %v797 = vmul.f32 %v771, 1.442695
    %v798 = vpow.pop %v797
    %v799 = vmul.f32 %v772, 1.442695
    %v800 = vpow.pop %v799
    %v801 = vmul.f32 %v773, 1.442695
    %v802 = vpow.pop %v801
    %v803 = vmul.f32 %v774, 1.442695
    %v804 = vpow.pop %v803
    %v805 = vmul.f32 %v775, 1.442695
    %v806 = vpow.pop %v805
    %v807 = vmul.f32 %v776, 1.442695
    %v808 = vpow.pop %v807
    %v809 = vsel %vm713, %v778, 0.0
    %v810 = vsel %vm714, %v780, 0.0
    %v811 = vsel %vm715, %v782, 0.0
    %v812 = vsel %vm716, %v784, 0.0
    %v813 = vsel %vm717, %v786, 0.0
    %v814 = vsel %vm718, %v788, 0.0
    %v815 = vsel %vm719, %v790, 0.0
    %v816 = vsel %vm720, %v792, 0.0
    %v817 = vsel %vm721, %v794, 0.0
    %v818 = vsel %vm722, %v796, 0.0
    %v819 = vsel %vm723, %v798, 0.0
    %v820 = vsel %vm724, %v800, 0.0
    %v821 = vsel %vm725, %v802, 0.0
    %v822 = vsel %vm726, %v804, 0.0
    %v823 = vsel %vm727, %v806, 0.0
    %v824 = vsel %vm728, %v808, 0.0
    %v825 = vadd.f32 %v809, %v810
    %v826 = vadd.f32 %v825, %v811
    %v827 = vadd.f32 %v826, %v812
    %v828 = vadd.f32 %v827, %v813
    %v829 = vadd.f32 %v828, %v814
    %v830 = vadd.f32 %v829, %v815
    %v831 = vadd.f32 %v830, %v816
    %v832 = vadd.f32 %v831, %v817
    %v833 = vadd.f32 %v832, %v818
    %v834 = vadd.f32 %v833, %v819
    %v835 = vadd.f32 %v834, %v820
    %v836 = vadd.f32 %v835, %v821
    %v837 = vadd.f32 %v836, %v822
    %v838 = vadd.f32 %v837, %v823
    %v839 = vadd.f32 %v838, %v824
    %v840 = vrot.slane %v839, 4
    %v841 = vadd.f32 %v839, %v840
    %v842 = vrot.slane %v841, 2
    %v843 = vadd.f32 %v841, %v842
    %v844 = vrot.slane %v843, 1
    %v845 = vadd.f32 %v843, %v844
    %v846 = vlog2.pop %v845
    %v847 = vmul.f32 %v846, 0.6931472
    %v848 = vmul.f32 %v847, -1.0
    %v849 = vsel %vm745, %v457, -inf
    %v850 = vsel %vm746, %v464, -inf
    %v851 = vsel %vm747, %v471, -inf
    %v852 = vsel %vm748, %v478, -inf
    %v853 = vsel %vm749, %v485, -inf
    %v854 = vsel %vm750, %v492, -inf
    %v855 = vsel %vm751, %v499, -inf
    %v856 = vsel %vm752, %v506, -inf
    %v857 = vsel %vm753, %v513, -inf
    %v858 = vsel %vm754, %v520, -inf
    %v859 = vsel %vm755, %v527, -inf
    %v860 = vsel %vm756, %v534, -inf
    %v861 = vsel %vm757, %v541, -inf
    %v862 = vsel %vm758, %v548, -inf
    %v863 = vsel %vm759, %v555, -inf
    %v864 = vsel %vm760, %v562, -inf
    %v865 = vmax.f32 %v849, %v853
    %v866 = vmax.f32 %v850, %v854
    %v867 = vmax.f32 %v851, %v855
    %v868 = vmax.f32 %v852, %v856
    %v869 = vmax.f32 %v865, %v857
    %v870 = vmax.f32 %v866, %v858
    %v871 = vmax.f32 %v867, %v859
    %v872 = vmax.f32 %v868, %v860
    %v873 = vmax.f32 %v869, %v861
    %v874 = vmax.f32 %v870, %v862
    %v875 = vmax.f32 %v871, %v863
    %v876 = vmax.f32 %v872, %v864
    %v877 = vmax.f32 %v873, %v874
    %v878 = vmax.f32 %v875, %v876
    %v879 = vmax.f32 %v877, %v878
    %v880 = vrot.slane %v879, 4
    %v881 = vmax.f32 %v879, %v880
    %v882 = vrot.slane %v881, 2
    %v883 = vmax.f32 %v881, %v882
    %v884 = vrot.slane %v883, 1
    %v885 = vmax.f32 %v883, %v884
    %v886 = vsub.f32 %v849, %v885
    %v887 = vsub.f32 %v850, %v885
    %v888 = vsub.f32 %v851, %v885
    %v889 = vsub.f32 %v852, %v885
    %v890 = vsub.f32 %v853, %v885
    %v891 = vsub.f32 %v854, %v885
    %v892 = vsub.f32 %v855, %v885
    %v893 = vsub.f32 %v856, %v885
    %v894 = vsub.f32 %v857, %v885
    %v895 = vsub.f32 %v858, %v885
    %v896 = vsub.f32 %v859, %v885
    %v897 = vsub.f32 %v860, %v885
    %v898 = vsub.f32 %v861, %v885
    %v899 = vsub.f32 %v862, %v885
    %v900 = vsub.f32 %v863, %v885
    %v901 = vsub.f32 %v864, %v885
    %v902 = vmul.f32 %v886, 1.442695
    %v903 = vpow.pop %v902
    %v904 = vmul.f32 %v887, 1.442695
    %v905 = vpow.pop %v904
    %v906 = vmul.f32 %v888, 1.442695
    %v907 = vpow.pop %v906
    %v908 = vmul.f32 %v889, 1.442695
    %v909 = vpow.pop %v908
    %v910 = vmul.f32 %v890, 1.442695
    %v911 = vpow.pop %v910
    %v912 = vmul.f32 %v891, 1.442695
    %v913 = vpow.pop %v912
    %v914 = vmul.f32 %v892, 1.442695
    %v915 = vpow.pop %v914
    %v916 = vmul.f32 %v893, 1.442695
    %v917 = vpow.pop %v916
    %v918 = vmul.f32 %v894, 1.442695
    %v919 = vpow.pop %v918
    %v920 = vmul.f32 %v895, 1.442695
    %v921 = vpow.pop %v920
    %v922 = vmul.f32 %v896, 1.442695
    %v923 = vpow.pop %v922
    %v924 = vmul.f32 %v897, 1.442695
    %v925 = vpow.pop %v924
    %v926 = vmul.f32 %v898, 1.442695
    %v927 = vpow.pop %v926
    %v928 = vmul.f32 %v899, 1.442695
    %v929 = vpow.pop %v928
    %v930 = vmul.f32 %v900, 1.442695
    %v931 = vpow.pop %v930
    %v932 = vmul.f32 %v901, 1.442695
    %v933 = vpow.pop %v932
    %v934 = vadd.f32 %v903, %v905
    %v935 = vadd.f32 %v934, %v907
    %v936 = vadd.f32 %v935, %v909
    %v937 = vadd.f32 %v936, %v911
    %v938 = vadd.f32 %v937, %v913
    %v939 = vadd.f32 %v938, %v915
    %v940 = vadd.f32 %v939, %v917
    %v941 = vadd.f32 %v940, %v919
    %v942 = vadd.f32 %v941, %v921
    %v943 = vadd.f32 %v942, %v923
    %v944 = vadd.f32 %v943, %v925
    %v945 = vadd.f32 %v944, %v927
    %v946 = vadd.f32 %v945, %v929
    %v947 = vadd.f32 %v946, %v931
    %v948 = vadd.f32 %v947, %v933
    %v949 = vrot.slane %v948, 4
    %v950 = vadd.f32 %v948, %v949
    %v951 = vrot.slane %v950, 2
    %v952 = vadd.f32 %v950, %v951
    %v953 = vrot.slane %v952, 1
    %v954 = vadd.f32 %v952, %v953
    %v955 = vlog2.pop %v954
    %v956 = vmul.f32 %v955, 0.6931472
    %v957 = vadd.f32 %v885, %v956
    %v958 = vsub.f32 %v848, %v957
    %v959 = vadd.f32 %v958, 0.3
    %v960 = vmax.f32 %v959, 0.0
    %961 = vst [vmem:[#allocation2] sm:$0x1] %v960
    // Predicated region
    $region26: #{tpu_custom_call.1} parent=1 // pred_check
      _
    $region27: #{tpu_custom_call.1} parent=1 // pred_check_branch
      %963 = sbr.rel (0) target = $region29
    $region28: #{tpu_custom_call.1} parent=1 // pred_region
      %s965 = ssub.s32 16, 16
      %966 = vsyncadd [#allocation3], %s965
      %s968 = sshll.u32 [#allocation2], 4
      %s969 = int_to_ptr.vmem [resolvable:$true] %s968
      %971 = dma.vmem_to_hbm [thread:$0]  %s969, 16, %s6, [#allocation3]
    $region29: #{tpu_custom_call.1} parent=1 // pred_fallthru
      _
    // Predicated region
    $region30: #{tpu_custom_call.1} parent=1 // pred_check
      _
    $region31: #{tpu_custom_call.1} parent=1 // pred_check_branch
      %973 = sbr.rel (0) target = $region33
    $region32: #{tpu_custom_call.1} parent=1 // pred_region
      %974 = dma.done [#allocation3], 16
    $region33: #{tpu_custom_call.1} parent=1 // pred_fallthru
      _
    %975 = vsyncpa [#allocation3], 1

</llo_original>
